<compile_context>
chip_gen: v5e
topology: v5e:2x2
jax: 0.10.0
libtpu: 0.0.40
codegen_flags: <defaults>
</compile_context>

<pallas_src>
import functools

import jax
import jax.numpy as jnp
from jax.experimental import pallas as pl
from jax.experimental.pallas import tpu as pltpu


def _target_pos_loss_kernel(x_ref, tgt_ref, loss_ref, *, min_t, inv_tp):
    """One grid step processes Bb batch rows.

    x_ref   : (Bb, N, T, C) VMEM -- raw trajectory block, C = 6 channels
    tgt_ref : (Bb, 1, 2)    VMEM -- target (x, y) per batch row
    loss_ref: (Bb, 1, N)    f32 VMEM
    """
    # Time-prefix + (x, y) channel slice, done in VMEM (no HBM intermediate).
    xy = x_ref[:, :, min_t:, 0:2].astype(jnp.float32)      # (Bb, N, Tp, 2)
    tgt = tgt_ref[...].astype(jnp.float32)                  # (Bb, 1, 2)

    diff = xy - tgt[:, :, None, :]                          # (Bb, N, Tp, 2)
    sq = jnp.sum(diff * diff, axis=-1)                      # (Bb, N, Tp)
    dist = jnp.sqrt(sq)                                     # torch.norm(..., -1)

    # softmin over time == softmax(-dist); normalization fused into the mean:
    #   mean_T( softmax(-dist) * sq ) = sum(e * sq) / sum(e) * (1 / Tp)
    neg = -dist
    m = jnp.max(neg, axis=-1, keepdims=True)                # (Bb, N, 1)
    e = jnp.exp(neg - m)                                    # (Bb, N, Tp)
    s_e = jnp.sum(e, axis=-1)                               # (Bb, N)
    s_esq = jnp.sum(e * sq, axis=-1)                        # (Bb, N)

    loss = (s_esq / s_e) * inv_tp          # exact divide only on the tiny tile
    loss_ref[...] = loss[:, None, :]       # (Bb, 1, N)


def _vmem_capacity_bytes():
    """Physical VMEM of the attached chip; conservative v7x default on failure."""
    try:
        info = pltpu.get_tpu_info()
        cap = int(getattr(info, "vmem_capacity_bytes", 0))
        if cap > 0:
            return cap
    except Exception:
        pass
    return 64 * 1024 * 1024   # v7x has the smallest VMEM (64 MiB)


def _choose_batch_block(B, row_bytes, vmem_cap):
    """Pick Bb (batch rows per grid step) and the padded batch size.

    The double-buffered input block (2 * Bb * row_bytes) is sized against the
    chip's VMEM.  Prefer one big block (per-step overhead ~0.35 us); if the
    whole batch fits and is large, split into 2 steps so both v7x TensorCores
    get work (on 1-TC v5e/v6e this costs at most one extra step, negligible at
    that size).  Non-divisible B: prefer a nearby divisor, else pad.
    """
    budget = max(row_bytes, min(vmem_cap // 4, 32 * 1024 * 1024))
    bb = max(1, min(B, budget // row_bytes))
    if bb >= B:
        if B >= 2 and (B // 2) * row_bytes >= (1 << 20):
            bb = -(-B // 2)               # split across the 2 v7x TensorCores
        else:
            return B, B                   # single full-batch block, no padding
    # Prefer a divisor of B close to bb: exact grid, no padding copy of x.
    for d in range(bb, max(0, bb // 2), -1):
        if B % d == 0:
            return d, B
    # Otherwise pad B up to a multiple of bb (padded rows are discarded).
    return bb, (-(-B // bb)) * bb


@functools.partial(jax.jit, static_argnames=("min_target_time",))
def target_pos_loss(x, target_pos, min_target_time=0.0):
    """Pallas implementation of TargetPosLoss.forward (agt_mask=None).

    x          : (B, N, T, 6) trajectory
    target_pos : (B, 2) target waypoints
    returns    : (B, N) float32 loss
    """
    B, N, T, C = x.shape
    assert target_pos.shape == (B, 2)
    # NOTE: int() truncation matches PyTorch's int(self.min_target_time * x.size(2)).
    min_t = int(min_target_time * T)
    Tp = T - min_t
    if Tp <= 0:
        raise ValueError(
            f"min_target_time={min_target_time} leaves an empty time window "
            f"(min_t={min_t} >= T={T}); loss is undefined.")

    row_bytes = N * T * C * x.dtype.itemsize
    vmem_cap = _vmem_capacity_bytes()
    Bb, B_pad = _choose_batch_block(B, row_bytes, vmem_cap)

    tgt = target_pos.reshape(B, 1, 2)
    if B_pad != B:
        x = jnp.pad(x, ((0, B_pad - B), (0, 0), (0, 0), (0, 0)))
        tgt = jnp.pad(tgt, ((0, B_pad - B), (0, 0), (0, 0)))

    grid = (B_pad // Bb,)

    # Resident VMEM: double-buffered input block + (tiny) target/output blocks.
    resident = 2 * (Bb * row_bytes
                    + Bb * 2 * tgt.dtype.itemsize
                    + Bb * N * 4)
    vmem_limit = int(min(vmem_cap, max(resident + (4 << 20), 32 << 20)))

    kernel = functools.partial(_target_pos_loss_kernel,
                               min_t=min_t, inv_tp=1.0 / float(Tp))

    grid_spec = pltpu.PrefetchScalarGridSpec(
        num_scalar_prefetch=0,
        grid=grid,
        in_specs=[
            # Last two block dims (T, C) equal the full array dims -> no
            # (8,128) divisibility constraint; slice/relayout happens in VMEM.
            pl.BlockSpec((Bb, N, T, C), lambda i: (i, 0, 0, 0)),
            pl.BlockSpec((Bb, 1, 2), lambda i: (i, 0, 0)),
        ],
        out_specs=pl.BlockSpec((Bb, 1, N), lambda i: (i, 0, 0)),
    )

    out = pl.pallas_call(
        kernel,
        out_shape=jax.ShapeDtypeStruct((B_pad, 1, N), jnp.float32),
        grid_spec=grid_spec,
        compiler_params=pltpu.CompilerParams(
            dimension_semantics=("parallel",),
            vmem_limit_bytes=vmem_limit,
        ),
    )(x, tgt)

    return out[:B, 0, :]   # drop padded rows / squeeze the size-1 middle dim


def _reference(x, target_pos, min_target_time=0.0):
    """Pure-JAX reference mirroring the PyTorch forward."""
    T = x.shape[2]
    min_t = int(min_target_time * T)
    x_pos = x[:, :, min_t:, :2].astype(jnp.float32)
    tgt = target_pos.astype(jnp.float32)[:, None, None, :]
    diff = x_pos - tgt
    dist = jnp.linalg.norm(diff, axis=-1)
    w = jax.nn.softmax(-dist, axis=-1)           # F.softmin over time
    loss = w * jnp.sum(diff ** 2, axis=-1)
    return jnp.mean(loss, axis=-1)


if __name__ == "__main__":
    key = jax.random.PRNGKey(0)
    k1, k2 = jax.random.split(key)

    B, N, T = 2, 8, 8
    min_target_time = 0.5  # only the last half of the horizon targets the waypoint

    x = jax.random.normal(k1, (B, N, T, 6), dtype=jnp.float32)
    target_pos = jax.random.normal(k2, (B, 2), dtype=jnp.float32)

    loss = target_pos_loss(x, target_pos, min_target_time=min_target_time)
    loss = jax.block_until_ready(loss)

    ref = _reference(x, target_pos, min_target_time=min_target_time)
    assert loss.shape == (B, N)
    assert jnp.allclose(loss, ref, atol=1e-5, rtol=1e-5), (loss, ref)

    print("KERNEL_OK")
</pallas_src>

<mosaic_0001>
module attributes {stable_mosaic.version = 11 : i64} {
  func.func @_target_pos_loss_kernel(%arg0: i32, %arg1: memref<2x8x8x6xf32, #tpu.memory_space<vmem>>, %arg2: memref<2x1x2xf32, #tpu.memory_space<vmem>>, %arg3: memref<2x1x8xf32, #tpu.memory_space<vmem>>) attributes {dimension_semantics = [#tpu.dimension_semantics<parallel>], iteration_bounds = array<i64: 1>, scalar_prefetch = 0 : i64, scratch_operands = 0 : i64, tpu.core_type = #tpu.core_type<tc>, window_params = [{transform_indices = @transform_0, window_bounds = array<i64: 2, 8, 8, 6>}, {transform_indices = @transform_1, window_bounds = array<i64: 2, 1, 2>}, {transform_indices = @transform_2, window_bounds = array<i64: 2, 1, 8>}]} {
    %c0 = arith.constant 0 : index
    %c0_0 = arith.constant 0 : index
    %c4 = arith.constant 4 : index
    %c0_1 = arith.constant 0 : index
    %0 = vector.load %arg1[%c0, %c0_0, %c4, %c0_1] : memref<2x8x8x6xf32, #tpu.memory_space<vmem>>, vector<2x8x4x2xf32>
    %c0_2 = arith.constant 0 : index
    %c0_3 = arith.constant 0 : index
    %c0_4 = arith.constant 0 : index
    %1 = vector.load %arg2[%c0_2, %c0_3, %c0_4] : memref<2x1x2xf32, #tpu.memory_space<vmem>>, vector<2x1x2xf32>
    %2 = vector.shape_cast %1 : vector<2x1x2xf32> to vector<2x1x1x2xf32>
    %3 = vector.broadcast %2 : vector<2x1x1x2xf32> to vector<2x8x4x2xf32>
    %4 = arith.subf %0, %3 : vector<2x8x4x2xf32>
    %5 = arith.mulf %4, %4 : vector<2x8x4x2xf32>
    %cst = arith.constant dense<0.000000e+00> : vector<2x8x4xf32>
    %6 = vector.multi_reduction <add>, %5, %cst [3] : vector<2x8x4x2xf32> to vector<2x8x4xf32>
    %7 = math.sqrt %6 : vector<2x8x4xf32>
    %cst_5 = arith.constant 0.000000e+00 : f32
    %8 = vector.broadcast %cst_5 : f32 to vector<2x8x4xf32>
    %9 = arith.subf %8, %7 : vector<2x8x4xf32>
    %cst_6 = arith.constant dense<0xFF800000> : vector<2x8xf32>
    %10 = vector.multi_reduction <maximumf>, %9, %cst_6 [2] : vector<2x8x4xf32> to vector<2x8xf32>
    %11 = vector.shape_cast %10 : vector<2x8xf32> to vector<2x8x1xf32>
    %12 = vector.broadcast %11 : vector<2x8x1xf32> to vector<2x8x4xf32>
    %13 = arith.subf %9, %12 : vector<2x8x4xf32>
    %14 = math.exp %13 : vector<2x8x4xf32>
    %cst_7 = arith.constant dense<0.000000e+00> : vector<2x8xf32>
    %15 = vector.multi_reduction <add>, %14, %cst_7 [2] : vector<2x8x4xf32> to vector<2x8xf32>
    %16 = arith.mulf %14, %6 : vector<2x8x4xf32>
    %cst_8 = arith.constant dense<0.000000e+00> : vector<2x8xf32>
    %17 = vector.multi_reduction <add>, %16, %cst_8 [2] : vector<2x8x4xf32> to vector<2x8xf32>
    %18 = arith.divf %17, %15 : vector<2x8xf32>
    %cst_9 = arith.constant 2.500000e-01 : f32
    %19 = vector.broadcast %cst_9 : f32 to vector<2x8xf32>
    %20 = arith.mulf %18, %19 : vector<2x8xf32>
    %21 = vector.shape_cast %20 : vector<2x8xf32> to vector<2x1x8xf32>
    %c0_10 = arith.constant 0 : index
    %c0_11 = arith.constant 0 : index
    %c0_12 = arith.constant 0 : index
    %22 = vector.load %arg3[%c0_10, %c0_11, %c0_12] : memref<2x1x8xf32, #tpu.memory_space<vmem>>, vector<2x1x8xf32>
    tpu.vector_store %arg3[%c0_10, %c0_11, %c0_12], %21 {strides = array<i32>} : memref<2x1x8xf32, #tpu.memory_space<vmem>>, vector<2x1x8xf32>,
    return
  }
  func.func @transform_0(%arg0: i32) -> (i32, i32, i32, i32) {
    %c0_i32 = arith.constant 0 : i32
    %c0_i32_0 = arith.constant 0 : i32
    %c0_i32_1 = arith.constant 0 : i32
    %c0_i32_2 = arith.constant 0 : i32
    return %arg0, %c0_i32, %c0_i32_0, %c0_i32_1 : i32, i32, i32, i32
  }
  func.func @transform_1(%arg0: i32) -> (i32, i32, i32) {
    %c0_i32 = arith.constant 0 : i32
    %c0_i32_0 = arith.constant 0 : i32
    %c0_i32_1 = arith.constant 0 : i32
    return %arg0, %c0_i32, %c0_i32_0 : i32, i32, i32
  }
  func.func @transform_2(%arg0: i32) -> (i32, i32, i32) {
    %c0_i32 = arith.constant 0 : i32
    %c0_i32_0 = arith.constant 0 : i32
    %c0_i32_1 = arith.constant 0 : i32
    return %arg0, %c0_i32, %c0_i32_0 : i32, i32, i32
  }
}

</mosaic_0001>

<llo_original>
// kernel: target_pos_loss.1
$region0: #{target_pos_loss.1}
  #allocation0 [shape = 'u32[]', space=smem, size = 0x4, offset = 0x4, fixed_abs, tag = 'smem constant byte address 0x4 - core index']
  #allocation1 [shape = 'u32[72,128]{1,0:T(1,128)}', space=vmem, size = 0x9000, scoped, tag = 'internal scratch']
  %s0 = inlined_call_operand.vmem [shape: f32[2,8,8,6], index: 0, kind: input, shape index: {}]
  %s1 = inlined_call_operand.vmem [shape: f32[2,1,2], index: 1, kind: input, shape index: {}]
  %s2 = inlined_call_operand.hbm [shape: f32[2,1,8], index: 2, kind: output, shape index: {}]
  %s3 = sld [smem:[#allocation0]]
  $region18: #{target_pos_loss.1} parent=0
    _
  %s5 = ssub.s32 1, %s3
  %s6 = scalar_select 0, %s5, %s3
  $region1: #{target_pos_loss.1} parent=0
    #allocation2 [shape = 'u8[1024]{0}', space=vmem, size = 0x400, scoped, tag = 'output window, operand 0, single buffered']
    #allocation3 [shape = 's32[1]{0}', space=sflag, size = 0x4, scoped, tag = 'scoped memory for target_pos_loss.1']
    %7 = vsyncpa [#allocation3], 0
    // Predicated region
    $region2: #{target_pos_loss.1} parent=1 // pred_check
      _
    $region3: #{target_pos_loss.1} parent=1 // pred_check_branch
      %9 = sbr.rel (0) target = $region5
    $region4: #{target_pos_loss.1} parent=1 // pred_region
      _
    $region5: #{target_pos_loss.1} parent=1 // pred_fallthru
      _
    // Predicated region
    $region6: #{target_pos_loss.1} parent=1 // pred_check
      _
    $region7: #{target_pos_loss.1} parent=1 // pred_check_branch
      %11 = sbr.rel (0) target = $region9
    $region8: #{target_pos_loss.1} parent=1 // pred_region
      _
    $region9: #{target_pos_loss.1} parent=1 // pred_fallthru
      _
    %v12 = vld [vmem:[%s0 + $0x4] sm:$0xf]
    %v13 = vld [vmem:[%s0 + $0xc] sm:$0xf]
    %v14 = vld [vmem:[%s0 + $0x14] sm:$0xf]
    %v15 = vld [vmem:[%s0 + $0x1c] sm:$0xf]
    %v16 = vld [vmem:[%s0 + $0x24] sm:$0xf]
    %v17 = vld [vmem:[%s0 + $0x2c] sm:$0xf]
    %v18 = vld [vmem:[%s0 + $0x34] sm:$0xf]
    %v19 = vld [vmem:[%s0 + $0x3c] sm:$0xf]
    %v20 = vld [vmem:[%s0 + $0x44] sm:$0xf]
    %v21 = vld [vmem:[%s0 + $0x4c] sm:$0xf]
    %v22 = vld [vmem:[%s0 + $0x54] sm:$0xf]
    %v23 = vld [vmem:[%s0 + $0x5c] sm:$0xf]
    %v24 = vld [vmem:[%s0 + $0x64] sm:$0xf]
    %v25 = vld [vmem:[%s0 + $0x6c] sm:$0xf]
    %v26 = vld [vmem:[%s0 + $0x74] sm:$0xf]
    %v27 = vld [vmem:[%s0 + $0x7c] sm:$0xf]
    %v28 = vld [vmem:[%s1] sm:$0x1]
    %v29 = vld [vmem:[%s1 + $0x1] sm:$0x1]
    %v32 = vperm.slane %v28, 0
    %v33 = vperm.slane %v29, 0
    %v36 = vsub.f32 %v12, %v32
    %v37 = vsub.f32 %v13, %v32
    %v38 = vsub.f32 %v14, %v32
    %v39 = vsub.f32 %v15, %v32
    %v40 = vsub.f32 %v16, %v32
    %v41 = vsub.f32 %v17, %v32
    %v42 = vsub.f32 %v18, %v32
    %v43 = vsub.f32 %v19, %v32
    %v44 = vsub.f32 %v20, %v33
    %v45 = vsub.f32 %v21, %v33
    %v46 = vsub.f32 %v22, %v33
    %v47 = vsub.f32 %v23, %v33
    %v48 = vsub.f32 %v24, %v33
    %v49 = vsub.f32 %v25, %v33
    %v50 = vsub.f32 %v26, %v33
    %v51 = vsub.f32 %v27, %v33
    %v52 = vmul.f32 %v36, %v36
    %v53 = vmul.f32 %v37, %v37
    %v54 = vmul.f32 %v38, %v38
    %v55 = vmul.f32 %v39, %v39
    %v56 = vmul.f32 %v40, %v40
    %v57 = vmul.f32 %v41, %v41
    %v58 = vmul.f32 %v42, %v42
    %v59 = vmul.f32 %v43, %v43
    %v60 = vmul.f32 %v44, %v44
    %v61 = vmul.f32 %v45, %v45
    %v62 = vmul.f32 %v46, %v46
    %v63 = vmul.f32 %v47, %v47
    %v64 = vmul.f32 %v48, %v48
    %v65 = vmul.f32 %v49, %v49
    %v66 = vmul.f32 %v50, %v50
    %v67 = vmul.f32 %v51, %v51
    %vm68 = vcmask 11264
    %v69 = vsel %vm68, %v52, 0.0
    %70 = vadd.xlane.f32.xlu0 %v69
    %v71 = vpop.xlane.xlu0 %70
    %v72 = vsel %vm68, %v53, 0.0
    %73 = vadd.xlane.f32.xlu0 %v72
    %v74 = vpop.xlane.xlu0 %73
    %v75 = vsel %vm68, %v54, 0.0
    %76 = vadd.xlane.f32.xlu0 %v75
    %v77 = vpop.xlane.xlu0 %76
    %v78 = vsel %vm68, %v55, 0.0
    %79 = vadd.xlane.f32.xlu0 %v78
    %v80 = vpop.xlane.xlu0 %79
    %v81 = vsel %vm68, %v56, 0.0
    %82 = vadd.xlane.f32.xlu0 %v81
    %v83 = vpop.xlane.xlu0 %82
    %v84 = vsel %vm68, %v57, 0.0
    %85 = vadd.xlane.f32.xlu0 %v84
    %v86 = vpop.xlane.xlu0 %85
    %v87 = vsel %vm68, %v58, 0.0
    %88 = vadd.xlane.f32.xlu0 %v87
    %v89 = vpop.xlane.xlu0 %88
    %v90 = vsel %vm68, %v59, 0.0
    %91 = vadd.xlane.f32.xlu0 %v90
    %v92 = vpop.xlane.xlu0 %91
    %v93 = vsel %vm68, %v60, 0.0
    %94 = vadd.xlane.f32.xlu0 %v93
    %v95 = vpop.xlane.xlu0 %94
    %v96 = vsel %vm68, %v61, 0.0
    %97 = vadd.xlane.f32.xlu0 %v96
    %v98 = vpop.xlane.xlu0 %97
    %v99 = vsel %vm68, %v62, 0.0
    %100 = vadd.xlane.f32.xlu0 %v99
    %v101 = vpop.xlane.xlu0 %100
    %v102 = vsel %vm68, %v63, 0.0
    %103 = vadd.xlane.f32.xlu0 %v102
    %v104 = vpop.xlane.xlu0 %103
    %v105 = vsel %vm68, %v64, 0.0
    %106 = vadd.xlane.f32.xlu0 %v105
    %v107 = vpop.xlane.xlu0 %106
    %v108 = vsel %vm68, %v65, 0.0
    %109 = vadd.xlane.f32.xlu0 %v108
    %v110 = vpop.xlane.xlu0 %109
    %v111 = vsel %vm68, %v66, 0.0
    %112 = vadd.xlane.f32.xlu0 %v111
    %v113 = vpop.xlane.xlu0 %112
    %v114 = vsel %vm68, %v67, 0.0
    %115 = vadd.xlane.f32.xlu0 %v114
    %v116 = vpop.xlane.xlu0 %115
    %v117 = vrsqrt.pop %v71
    %v118 = vmul.f32 %v117, %v71
    %v119 = vmul.f32 %v118, %v117
    %v120 = vmul.f32 0.5, %v119
    %v121 = vsub.f32 1.5, %v120
    %v122 = vmul.f32 %v117, %v121
    %v123 = vmul.f32 %v71, %v122
    %vm124 = vcmp.eq.f32.partialorder %v71, inf
    %v125 = vsel %vm124, %v71, %v123
    %vm126 = vcmp.eq.f32.partialorder %v71, 0.0
    %v127 = vand.u32 %v71, 2147483648
    %v128 = vsel %vm126, %v127, %v125
    %v129 = vrsqrt.pop %v74
    %v130 = vmul.f32 %v129, %v74
    %v131 = vmul.f32 %v130, %v129
    %v132 = vmul.f32 0.5, %v131
    %v133 = vsub.f32 1.5, %v132
    %v134 = vmul.f32 %v129, %v133
    %v135 = vmul.f32 %v74, %v134
    %vm136 = vcmp.eq.f32.partialorder %v74, inf
    %v137 = vsel %vm136, %v74, %v135
    %vm138 = vcmp.eq.f32.partialorder %v74, 0.0
    %v139 = vand.u32 %v74, 2147483648
    %v140 = vsel %vm138, %v139, %v137
    %v141 = vrsqrt.pop %v77
    %v142 = vmul.f32 %v141, %v77
    %v143 = vmul.f32 %v142, %v141
    %v144 = vmul.f32 0.5, %v143
    %v145 = vsub.f32 1.5, %v144
    %v146 = vmul.f32 %v141, %v145
    %v147 = vmul.f32 %v77, %v146
    %vm148 = vcmp.eq.f32.partialorder %v77, inf
    %v149 = vsel %vm148, %v77, %v147
    %vm150 = vcmp.eq.f32.partialorder %v77, 0.0
    %v151 = vand.u32 %v77, 2147483648
    %v152 = vsel %vm150, %v151, %v149
    %v153 = vrsqrt.pop %v80
    %v154 = vmul.f32 %v153, %v80
    %v155 = vmul.f32 %v154, %v153
    %v156 = vmul.f32 0.5, %v155
    %v157 = vsub.f32 1.5, %v156
    %v158 = vmul.f32 %v153, %v157
    %v159 = vmul.f32 %v80, %v158
    %vm160 = vcmp.eq.f32.partialorder %v80, inf
    %v161 = vsel %vm160, %v80, %v159
    %vm162 = vcmp.eq.f32.partialorder %v80, 0.0
    %v163 = vand.u32 %v80, 2147483648
    %v164 = vsel %vm162, %v163, %v161
    %v165 = vrsqrt.pop %v83
    %v166 = vmul.f32 %v165, %v83
    %v167 = vmul.f32 %v166, %v165
    %v168 = vmul.f32 0.5, %v167
    %v169 = vsub.f32 1.5, %v168
    %v170 = vmul.f32 %v165, %v169
    %v171 = vmul.f32 %v83, %v170
    %vm172 = vcmp.eq.f32.partialorder %v83, inf
    %v173 = vsel %vm172, %v83, %v171
    %vm174 = vcmp.eq.f32.partialorder %v83, 0.0
    %v175 = vand.u32 %v83, 2147483648
    %v176 = vsel %vm174, %v175, %v173
    %v177 = vrsqrt.pop %v86
    %v178 = vmul.f32 %v177, %v86
    %v179 = vmul.f32 %v178, %v177
    %v180 = vmul.f32 0.5, %v179
    %v181 = vsub.f32 1.5, %v180
    %v182 = vmul.f32 %v177, %v181
    %v183 = vmul.f32 %v86, %v182
    %vm184 = vcmp.eq.f32.partialorder %v86, inf
    %v185 = vsel %vm184, %v86, %v183
    %vm186 = vcmp.eq.f32.partialorder %v86, 0.0
    %v187 = vand.u32 %v86, 2147483648
    %v188 = vsel %vm186, %v187, %v185
    %v189 = vrsqrt.pop %v89
    %v190 = vmul.f32 %v189, %v89
    %v191 = vmul.f32 %v190, %v189
    %v192 = vmul.f32 0.5, %v191
    %v193 = vsub.f32 1.5, %v192
    %v194 = vmul.f32 %v189, %v193
    %v195 = vmul.f32 %v89, %v194
    %vm196 = vcmp.eq.f32.partialorder %v89, inf
    %v197 = vsel %vm196, %v89, %v195
    %vm198 = vcmp.eq.f32.partialorder %v89, 0.0
    %v199 = vand.u32 %v89, 2147483648
    %v200 = vsel %vm198, %v199, %v197
    %v201 = vrsqrt.pop %v92
    %v202 = vmul.f32 %v201, %v92
    %v203 = vmul.f32 %v202, %v201
    %v204 = vmul.f32 0.5, %v203
    %v205 = vsub.f32 1.5, %v204
    %v206 = vmul.f32 %v201, %v205
    %v207 = vmul.f32 %v92, %v206
    %vm208 = vcmp.eq.f32.partialorder %v92, inf
    %v209 = vsel %vm208, %v92, %v207
    %vm210 = vcmp.eq.f32.partialorder %v92, 0.0
    %v211 = vand.u32 %v92, 2147483648
    %v212 = vsel %vm210, %v211, %v209
    %v213 = vrsqrt.pop %v95
    %v214 = vmul.f32 %v213, %v95
    %v215 = vmul.f32 %v214, %v213
    %v216 = vmul.f32 0.5, %v215
    %v217 = vsub.f32 1.5, %v216
    %v218 = vmul.f32 %v213, %v217
    %v219 = vmul.f32 %v95, %v218
    %vm220 = vcmp.eq.f32.partialorder %v95, inf
    %v221 = vsel %vm220, %v95, %v219
    %vm222 = vcmp.eq.f32.partialorder %v95, 0.0
    %v223 = vand.u32 %v95, 2147483648
    %v224 = vsel %vm222, %v223, %v221
    %v225 = vrsqrt.pop %v98
    %v226 = vmul.f32 %v225, %v98
    %v227 = vmul.f32 %v226, %v225
    %v228 = vmul.f32 0.5, %v227
    %v229 = vsub.f32 1.5, %v228
    %v230 = vmul.f32 %v225, %v229
    %v231 = vmul.f32 %v98, %v230
    %vm232 = vcmp.eq.f32.partialorder %v98, inf
    %v233 = vsel %vm232, %v98, %v231
    %vm234 = vcmp.eq.f32.partialorder %v98, 0.0
    %v235 = vand.u32 %v98, 2147483648
    %v236 = vsel %vm234, %v235, %v233
    %v237 = vrsqrt.pop %v101
    %v238 = vmul.f32 %v237, %v101
    %v239 = vmul.f32 %v238, %v237
    %v240 = vmul.f32 0.5, %v239
    %v241 = vsub.f32 1.5, %v240
    %v242 = vmul.f32 %v237, %v241
    %v243 = vmul.f32 %v101, %v242
    %vm244 = vcmp.eq.f32.partialorder %v101, inf
    %v245 = vsel %vm244, %v101, %v243
    %vm246 = vcmp.eq.f32.partialorder %v101, 0.0
    %v247 = vand.u32 %v101, 2147483648
    %v248 = vsel %vm246, %v247, %v245
    %v249 = vrsqrt.pop %v104
    %v250 = vmul.f32 %v249, %v104
    %v251 = vmul.f32 %v250, %v249
    %v252 = vmul.f32 0.5, %v251
    %v253 = vsub.f32 1.5, %v252
    %v254 = vmul.f32 %v249, %v253
    %v255 = vmul.f32 %v104, %v254
    %vm256 = vcmp.eq.f32.partialorder %v104, inf
    %v257 = vsel %vm256, %v104, %v255
    %vm258 = vcmp.eq.f32.partialorder %v104, 0.0
    %v259 = vand.u32 %v104, 2147483648
    %v260 = vsel %vm258, %v259, %v257
    %v261 = vrsqrt.pop %v107
    %v262 = vmul.f32 %v261, %v107
    %v263 = vmul.f32 %v262, %v261
    %v264 = vmul.f32 0.5, %v263
    %v265 = vsub.f32 1.5, %v264
    %v266 = vmul.f32 %v261, %v265
    %v267 = vmul.f32 %v107, %v266
    %vm268 = vcmp.eq.f32.partialorder %v107, inf
    %v269 = vsel %vm268, %v107, %v267
    %vm270 = vcmp.eq.f32.partialorder %v107, 0.0
    %v271 = vand.u32 %v107, 2147483648
    %v272 = vsel %vm270, %v271, %v269
    %v273 = vrsqrt.pop %v110
    %v274 = vmul.f32 %v273, %v110
    %v275 = vmul.f32 %v274, %v273
    %v276 = vmul.f32 0.5, %v275
    %v277 = vsub.f32 1.5, %v276
    %v278 = vmul.f32 %v273, %v277
    %v279 = vmul.f32 %v110, %v278
    %vm280 = vcmp.eq.f32.partialorder %v110, inf
    %v281 = vsel %vm280, %v110, %v279
    %vm282 = vcmp.eq.f32.partialorder %v110, 0.0
    %v283 = vand.u32 %v110, 2147483648
    %v284 = vsel %vm282, %v283, %v281
    %v285 = vrsqrt.pop %v113
    %v286 = vmul.f32 %v285, %v113
    %v287 = vmul.f32 %v286, %v285
    %v288 = vmul.f32 0.5, %v287
    %v289 = vsub.f32 1.5, %v288
    %v290 = vmul.f32 %v285, %v289
    %v291 = vmul.f32 %v113, %v290
    %vm292 = vcmp.eq.f32.partialorder %v113, inf
    %v293 = vsel %vm292, %v113, %v291
    %vm294 = vcmp.eq.f32.partialorder %v113, 0.0
    %v295 = vand.u32 %v113, 2147483648
    %v296 = vsel %vm294, %v295, %v293
    %v297 = vrsqrt.pop %v116
    %v298 = vmul.f32 %v297, %v116
    %v299 = vmul.f32 %v298, %v297
    %v300 = vmul.f32 0.5, %v299
    %v301 = vsub.f32 1.5, %v300
    %v302 = vmul.f32 %v297, %v301
    %v303 = vmul.f32 %v116, %v302
    %vm304 = vcmp.eq.f32.partialorder %v116, inf
    %v305 = vsel %vm304, %v116, %v303
    %vm306 = vcmp.eq.f32.partialorder %v116, 0.0
    %v307 = vand.u32 %v116, 2147483648
    %v308 = vsel %vm306, %v307, %v305
    %v309 = vsub.f32 0.0, %v128
    %v310 = vsub.f32 0.0, %v140
    %v311 = vsub.f32 0.0, %v152
    %v312 = vsub.f32 0.0, %v164
    %v313 = vsub.f32 0.0, %v176
    %v314 = vsub.f32 0.0, %v188
    %v315 = vsub.f32 0.0, %v200
    %v316 = vsub.f32 0.0, %v212
    %v317 = vsub.f32 0.0, %v224
    %v318 = vsub.f32 0.0, %v236
    %v319 = vsub.f32 0.0, %v248
    %v320 = vsub.f32 0.0, %v260
    %v321 = vsub.f32 0.0, %v272
    %v322 = vsub.f32 0.0, %v284
    %v323 = vsub.f32 0.0, %v296
    %v324 = vsub.f32 0.0, %v308
    %v341 = vlaneseq
    %v342 = vand.u32 %v341, 127
    %v343 = vperm.slane %v309, %v342
    %v344 = vperm.slane %v310, %v342
    %v345 = vperm.slane %v311, %v342
    %v346 = vperm.slane %v312, %v342
    %v347 = vperm.slane %v313, %v342
    %v348 = vperm.slane %v314, %v342
    %v349 = vperm.slane %v315, %v342
    %v350 = vperm.slane %v316, %v342
    %v351 = vperm.slane %v317, %v342
    %v352 = vperm.slane %v318, %v342
    %v353 = vperm.slane %v319, %v342
    %v354 = vperm.slane %v320, %v342
    %v355 = vperm.slane %v321, %v342
    %v356 = vperm.slane %v322, %v342
    %v357 = vperm.slane %v323, %v342
    %v358 = vperm.slane %v324, %v342
    %vm359 = vcmask 1041409
    %v360 = vsel %vm359, %v344, %v343
    %vm361 = vcmask 1042434
    %v362 = vsel %vm361, %v345, %v360
    %vm363 = vcmask 1043459
    %v364 = vsel %vm363, %v346, %v362
    %vm365 = vcmask 1044484
    %v366 = vsel %vm365, %v347, %v364
    %vm367 = vcmask 1045509
    %v368 = vsel %vm367, %v348, %v366
    %vm369 = vcmask 1046534
    %v370 = vsel %vm369, %v349, %v368
    %vm371 = vcmask 1047559
    %v372 = vsel %vm371, %v350, %v370
    %v373 = vsel %vm359, %v352, %v351
    %v374 = vsel %vm361, %v353, %v373
    %v375 = vsel %vm363, %v354, %v374
    %v376 = vsel %vm365, %v355, %v375
    %v377 = vsel %vm367, %v356, %v376
    %v378 = vsel %vm369, %v357, %v377
    %v379 = vsel %vm371, %v358, %v378
    %vm382 = vcmask 31744
    %v383 = vsel %vm382, %v372, -inf
    %384 = vmax.xlane.f32.xlu0 %v383
    %v385 = vpop.xlane.xlu0 %384
    %v386 = vsel %vm382, %v379, -inf
    %387 = vmax.xlane.f32.xlu0 %v386
    %v388 = vpop.xlane.xlu0 %387
    %v391 = vperm.slane %v385, 0
    %v392 = vperm.slane %v385, 1
    %v393 = vperm.slane %v385, 2
    %v394 = vperm.slane %v385, 3
    %v395 = vperm.slane %v385, 4
    %v396 = vperm.slane %v385, 5
    %v397 = vperm.slane %v385, 6
    %v398 = vperm.slane %v385, 7
    %v399 = vperm.slane %v388, 0
    %v400 = vperm.slane %v388, 1
    %v401 = vperm.slane %v388, 2
    %v402 = vperm.slane %v388, 3
    %v403 = vperm.slane %v388, 4
    %v404 = vperm.slane %v388, 5
    %v405 = vperm.slane %v388, 6
    %v406 = vperm.slane %v388, 7
    %v423 = vsub.f32 %v309, %v391
    %v424 = vsub.f32 %v310, %v392
    %v425 = vsub.f32 %v311, %v393
    %v426 = vsub.f32 %v312, %v394
    %v427 = vsub.f32 %v313, %v395
    %v428 = vsub.f32 %v314, %v396
    %v429 = vsub.f32 %v315, %v397
    %v430 = vsub.f32 %v316, %v398
    %v431 = vsub.f32 %v317, %v399
    %v432 = vsub.f32 %v318, %v400
    %v433 = vsub.f32 %v319, %v401
    %v434 = vsub.f32 %v320, %v402
    %v435 = vsub.f32 %v321, %v403
    %v436 = vsub.f32 %v322, %v404
    %v437 = vsub.f32 %v323, %v405
    %v438 = vsub.f32 %v324, %v406
    %v439 = vmul.f32 %v423, 1.442695
    %v440 = vpow.pop %v439
    %v441 = vmul.f32 %v424, 1.442695
    %v442 = vpow.pop %v441
    %v443 = vmul.f32 %v425, 1.442695
    %v444 = vpow.pop %v443
    %v445 = vmul.f32 %v426, 1.442695
    %v446 = vpow.pop %v445
    %v447 = vmul.f32 %v427, 1.442695
    %v448 = vpow.pop %v447
    %v449 = vmul.f32 %v428, 1.442695
    %v450 = vpow.pop %v449
    %v451 = vmul.f32 %v429, 1.442695
    %v452 = vpow.pop %v451
    %v453 = vmul.f32 %v430, 1.442695
    %v454 = vpow.pop %v453
    %v455 = vmul.f32 %v431, 1.442695
    %v456 = vpow.pop %v455
    %v457 = vmul.f32 %v432, 1.442695
    %v458 = vpow.pop %v457
    %v459 = vmul.f32 %v433, 1.442695
    %v460 = vpow.pop %v459
    %v461 = vmul.f32 %v434, 1.442695
    %v462 = vpow.pop %v461
    %v463 = vmul.f32 %v435, 1.442695
    %v464 = vpow.pop %v463
    %v465 = vmul.f32 %v436, 1.442695
    %v466 = vpow.pop %v465
    %v467 = vmul.f32 %v437, 1.442695
    %v468 = vpow.pop %v467
    %v469 = vmul.f32 %v438, 1.442695
    %v470 = vpow.pop %v469
    %487 = vset.pattern.permute.xlu0 0
    %488 = vperm.xlu0 %487, %v440
    %v489 = vpop.permute.xlu0 %488
    %490 = vset.pattern.permute.xlu0 0
    %491 = vperm.xlu0 %490, %v442
    %v492 = vpop.permute.xlu0 %491
    %493 = vset.pattern.permute.xlu0 0
    %494 = vperm.xlu0 %493, %v444
    %v495 = vpop.permute.xlu0 %494
    %496 = vset.pattern.permute.xlu0 0
    %497 = vperm.xlu0 %496, %v446
    %v498 = vpop.permute.xlu0 %497
    %499 = vset.pattern.permute.xlu0 0
    %500 = vperm.xlu0 %499, %v448
    %v501 = vpop.permute.xlu0 %500
    %502 = vset.pattern.permute.xlu0 0
    %503 = vperm.xlu0 %502, %v450
    %v504 = vpop.permute.xlu0 %503
    %505 = vset.pattern.permute.xlu0 0
    %506 = vperm.xlu0 %505, %v452
    %v507 = vpop.permute.xlu0 %506
    %508 = vset.pattern.permute.xlu0 0
    %509 = vperm.xlu0 %508, %v454
    %v510 = vpop.permute.xlu0 %509
    %511 = vset.pattern.permute.xlu0 0
    %512 = vperm.xlu0 %511, %v456
    %v513 = vpop.permute.xlu0 %512
    %514 = vset.pattern.permute.xlu0 0
    %515 = vperm.xlu0 %514, %v458
    %v516 = vpop.permute.xlu0 %515
    %517 = vset.pattern.permute.xlu0 0
    %518 = vperm.xlu0 %517, %v460
    %v519 = vpop.permute.xlu0 %518
    %520 = vset.pattern.permute.xlu0 0
    %521 = vperm.xlu0 %520, %v462
    %v522 = vpop.permute.xlu0 %521
    %523 = vset.pattern.permute.xlu0 0
    %524 = vperm.xlu0 %523, %v464
    %v525 = vpop.permute.xlu0 %524
    %526 = vset.pattern.permute.xlu0 0
    %527 = vperm.xlu0 %526, %v466
    %v528 = vpop.permute.xlu0 %527
    %529 = vset.pattern.permute.xlu0 0
    %530 = vperm.xlu0 %529, %v468
    %v531 = vpop.permute.xlu0 %530
    %532 = vset.pattern.permute.xlu0 0
    %533 = vperm.xlu0 %532, %v470
    %v534 = vpop.permute.xlu0 %533
    %v535 = vperm.slane %v489, %v342
    %v536 = vperm.slane %v492, %v342
    %v537 = vperm.slane %v495, %v342
    %v538 = vperm.slane %v498, %v342
    %v539 = vperm.slane %v501, %v342
    %v540 = vperm.slane %v504, %v342
    %v541 = vperm.slane %v507, %v342
    %v542 = vperm.slane %v510, %v342
    %v543 = vperm.slane %v513, %v342
    %v544 = vperm.slane %v516, %v342
    %v545 = vperm.slane %v519, %v342
    %v546 = vperm.slane %v522, %v342
    %v547 = vperm.slane %v525, %v342
    %v548 = vperm.slane %v528, %v342
    %v549 = vperm.slane %v531, %v342
    %v550 = vperm.slane %v534, %v342
    %v551 = vsel %vm359, %v536, %v535
    %v552 = vsel %vm361, %v537, %v551
    %v553 = vsel %vm363, %v538, %v552
    %v554 = vsel %vm365, %v539, %v553
    %v555 = vsel %vm367, %v540, %v554
    %v556 = vsel %vm369, %v541, %v555
    %v557 = vsel %vm371, %v542, %v556
    %v558 = vsel %vm359, %v544, %v543
    %v559 = vsel %vm361, %v545, %v558
    %v560 = vsel %vm363, %v546, %v559
    %v561 = vsel %vm365, %v547, %v560
    %v562 = vsel %vm367, %v548, %v561
    %v563 = vsel %vm369, %v549, %v562
    %v564 = vsel %vm371, %v550, %v563
    %v567 = vsel %vm382, %v557, 0.0
    %568 = vadd.xlane.f32.xlu0 %v567
    %v569 = vpop.xlane.xlu0 %568
    %v570 = vsel %vm382, %v564, 0.0
    %571 = vadd.xlane.f32.xlu0 %v570
    %v572 = vpop.xlane.xlu0 %571
    %v573 = vmul.f32 %v440, %v71
    %v574 = vmul.f32 %v442, %v74
    %v575 = vmul.f32 %v444, %v77
    %v576 = vmul.f32 %v446, %v80
    %v577 = vmul.f32 %v448, %v83
    %v578 = vmul.f32 %v450, %v86
    %v579 = vmul.f32 %v452, %v89
    %v580 = vmul.f32 %v454, %v92
    %v581 = vmul.f32 %v456, %v95
    %v582 = vmul.f32 %v458, %v98
    %v583 = vmul.f32 %v460, %v101
    %v584 = vmul.f32 %v462, %v104
    %v585 = vmul.f32 %v464, %v107
    %v586 = vmul.f32 %v466, %v110
    %v587 = vmul.f32 %v468, %v113
    %v588 = vmul.f32 %v470, %v116
    %605 = vset.pattern.permute.xlu0 0
    %606 = vperm.xlu0 %605, %v573
    %v607 = vpop.permute.xlu0 %606
    %608 = vset.pattern.permute.xlu0 0
    %609 = vperm.xlu0 %608, %v574
    %v610 = vpop.permute.xlu0 %609
    %611 = vset.pattern.permute.xlu0 0
    %612 = vperm.xlu0 %611, %v575
    %v613 = vpop.permute.xlu0 %612
    %614 = vset.pattern.permute.xlu0 0
    %615 = vperm.xlu0 %614, %v576
    %v616 = vpop.permute.xlu0 %615
    %617 = vset.pattern.permute.xlu0 0
    %618 = vperm.xlu0 %617, %v577
    %v619 = vpop.permute.xlu0 %618
    %620 = vset.pattern.permute.xlu0 0
    %621 = vperm.xlu0 %620, %v578
    %v622 = vpop.permute.xlu0 %621
    %623 = vset.pattern.permute.xlu0 0
    %624 = vperm.xlu0 %623, %v579
    %v625 = vpop.permute.xlu0 %624
    %626 = vset.pattern.permute.xlu0 0
    %627 = vperm.xlu0 %626, %v580
    %v628 = vpop.permute.xlu0 %627
    %629 = vset.pattern.permute.xlu0 0
    %630 = vperm.xlu0 %629, %v581
    %v631 = vpop.permute.xlu0 %630
    %632 = vset.pattern.permute.xlu0 0
    %633 = vperm.xlu0 %632, %v582
    %v634 = vpop.permute.xlu0 %633
    %635 = vset.pattern.permute.xlu0 0
    %636 = vperm.xlu0 %635, %v583
    %v637 = vpop.permute.xlu0 %636
    %638 = vset.pattern.permute.xlu0 0
    %639 = vperm.xlu0 %638, %v584
    %v640 = vpop.permute.xlu0 %639
    %641 = vset.pattern.permute.xlu0 0
    %642 = vperm.xlu0 %641, %v585
    %v643 = vpop.permute.xlu0 %642
    %644 = vset.pattern.permute.xlu0 0
    %645 = vperm.xlu0 %644, %v586
    %v646 = vpop.permute.xlu0 %645
    %647 = vset.pattern.permute.xlu0 0
    %648 = vperm.xlu0 %647, %v587
    %v649 = vpop.permute.xlu0 %648
    %650 = vset.pattern.permute.xlu0 0
    %651 = vperm.xlu0 %650, %v588
    %v652 = vpop.permute.xlu0 %651
    %v653 = vperm.slane %v607, %v342
    %v654 = vperm.slane %v610, %v342
    %v655 = vperm.slane %v613, %v342
    %v656 = vperm.slane %v616, %v342
    %v657 = vperm.slane %v619, %v342
    %v658 = vperm.slane %v622, %v342
    %v659 = vperm.slane %v625, %v342
    %v660 = vperm.slane %v628, %v342
    %v661 = vperm.slane %v631, %v342
    %v662 = vperm.slane %v634, %v342
    %v663 = vperm.slane %v637, %v342
    %v664 = vperm.slane %v640, %v342
    %v665 = vperm.slane %v643, %v342
    %v666 = vperm.slane %v646, %v342
    %v667 = vperm.slane %v649, %v342
    %v668 = vperm.slane %v652, %v342
    %v669 = vsel %vm359, %v654, %v653
    %v670 = vsel %vm361, %v655, %v669
    %v671 = vsel %vm363, %v656, %v670
    %v672 = vsel %vm365, %v657, %v671
    %v673 = vsel %vm367, %v658, %v672
    %v674 = vsel %vm369, %v659, %v673
    %v675 = vsel %vm371, %v660, %v674
    %v676 = vsel %vm359, %v662, %v661
    %v677 = vsel %vm361, %v663, %v676
    %v678 = vsel %vm363, %v664, %v677
    %v679 = vsel %vm365, %v665, %v678
    %v680 = vsel %vm367, %v666, %v679
    %v681 = vsel %vm369, %v667, %v680
    %v682 = vsel %vm371, %v668, %v681
    %v685 = vsel %vm382, %v675, 0.0
    %686 = vadd.xlane.f32.xlu0 %v685
    %v687 = vpop.xlane.xlu0 %686
    %v688 = vsel %vm382, %v682, 0.0
    %689 = vadd.xlane.f32.xlu0 %v688
    %v690 = vpop.xlane.xlu0 %689
    %v691 = vrcp.pop %v569
    %v692 = vmul.f32 %v569, %v691
    %v693 = vsub.f32 1.0, %v692
    %v694 = vmul.f32 %v691, %v693
    %v695 = vadd.f32 %v691, %v694
    %vm696 = vweird.f32 %v569
    %vm697 = vweird.f32 %v691
    %vm698 = vmor %vm696, %vm697
    %v699 = vsel %vm698, %v691, %v695
    %v700 = vand.u32 2147483647, %v569
    %vm701 = vcmp.eq.f32.partialorder %v700, 8.507059e+37
    %v702 = vand.u32 %v569, 2147483648
    %v703 = vor.u32 1.1754944e-38, %v702
    %v704 = vsel %vm701, %v703, %v699
    %v705 = vmul.f32 %v687, %v704
    %v706 = vrcp.pop %v572
    %v707 = vmul.f32 %v572, %v706
    %v708 = vsub.f32 1.0, %v707
    %v709 = vmul.f32 %v706, %v708
    %v710 = vadd.f32 %v706, %v709
    %vm711 = vweird.f32 %v572
    %vm712 = vweird.f32 %v706
    %vm713 = vmor %vm711, %vm712
    %v714 = vsel %vm713, %v706, %v710
    %v715 = vand.u32 2147483647, %v572
    %vm716 = vcmp.eq.f32.partialorder %v715, 8.507059e+37
    %v717 = vand.u32 %v572, 2147483648
    %v718 = vor.u32 1.1754944e-38, %v717
    %v719 = vsel %vm716, %v718, %v714
    %v720 = vmul.f32 %v690, %v719
    %v721 = vmul.f32 %v705, 0.25
    %v722 = vmul.f32 %v720, 0.25
    %v725 = vperm.slane %v721, %v342
    %v726 = vperm.slane %v722, %v342
    %vm729 = vcmask 57344
    %730 = vst.msk [vmem:[#allocation2] sm:$0x1] %vm729, %v725
    %731 = vst.msk [vmem:[#allocation2 + $0x1] sm:$0x1] %vm729, %v726
    // Predicated region
    $region10: #{target_pos_loss.1} parent=1 // pred_check
      _
    $region11: #{target_pos_loss.1} parent=1 // pred_check_branch
      %733 = sbr.rel (0) target = $region13
    $region12: #{target_pos_loss.1} parent=1 // pred_region
      %735 = vsyncadd [#allocation3], 0
      %s736 = sshll.u32 [#allocation2], 4
      %s737 = int_to_ptr.vmem [resolvable:$true] %s736
      %s738 = sshll.u32 %s2, 4
      %s739 = int_to_ptr.hbm [resolvable:$true] %s738
      %744 = dma.vmem_to_hbm [thread:$0]  %s737, 32, %s739, [#allocation3], 16, 16, 1
    $region13: #{target_pos_loss.1} parent=1 // pred_fallthru
      _
    // Predicated region
    $region14: #{target_pos_loss.1} parent=1 // pred_check
      _
    $region15: #{target_pos_loss.1} parent=1 // pred_check_branch
      %746 = sbr.rel (0) target = $region17
    $region16: #{target_pos_loss.1} parent=1 // pred_region
      %748 = dma.done [#allocation3], 32
    $region17: #{target_pos_loss.1} parent=1 // pred_fallthru
      _
    %749 = vsyncpa [#allocation3], 1

</llo_original>
